<compile_context>
chip_gen: v7x
topology: tpu7x:2x2x1
jax: 0.10.0
libtpu: 0.0.40
codegen_flags: <defaults>
</compile_context>

<pallas_src>
import functools

import jax
import jax.numpy as jnp
from jax.experimental import pallas as pl
from jax.experimental.pallas import tpu as pltpu

LANE = 128      # vreg lane width (last dim)
SUBLANE = 8     # vreg sublane width (second-to-last dim)


def _round_up(n, m):
    return ((n + m - 1) // m) * m


def _tpu_config():
    """(bf16_epilogue, two_cores) from the local chip generation."""
    kind = ""
    try:
        kind = jax.devices()[0].device_kind.lower()
    except Exception:
        pass
    bf16_epilogue = ("v6" in kind) or ("v7" in kind)   # v5e/older: no bf16 VPU -> f32
    two_cores = "v7" in kind                           # v7x: 2 TensorCores per chip
    return bf16_epilogue, two_cores


# ----------------------------------------------------------------------------
# Pallas kernel: fused 3-layer MLP, bf16 MXU inputs, f32 accumulation
# ----------------------------------------------------------------------------
def dqn_mlp_kernel(x_ref, w1_ref, w2_ref, b2_ref, w3_ref, b3_ref, o_ref, *,
                   bf16_epilogue):
    epi = jnp.bfloat16 if bf16_epilogue else jnp.float32

    # Layer 1: (TM, Fp) @ (Fp, 512); b1 is folded into W1's bias-marker row,
    # x arrives already bf16 from the wrapper -> no in-kernel cast / bias add.
    h1 = jnp.dot(x_ref[...], w1_ref[...], preferred_element_type=jnp.float32)
    h1 = jnp.maximum(h1.astype(epi), 0).astype(jnp.bfloat16)

    # Layer 2: (TM, 512) @ (512, 128); bias + ReLU in the chip's epilogue dtype.
    h2 = jnp.dot(h1, w2_ref[...], preferred_element_type=jnp.float32)
    h2 = jnp.maximum(h2.astype(epi) + b2_ref[...], 0).astype(jnp.bfloat16)

    # Layer 3: (TM, 128) @ (128, Ap); Ap lane-padded to 128 => dense vst. f32 out.
    out = jnp.dot(h2, w3_ref[...], preferred_element_type=jnp.float32)
    o_ref[...] = out + b3_ref[...]


@functools.partial(jax.jit, static_argnames=("tm", "bf16_epilogue"))
def _dqn_mlp_call(x_pad, w1, w2, b2, w3, b3, *, tm, bf16_epilogue):
    n_pad, f_pad = x_pad.shape
    h1 = w1.shape[1]
    h2 = w2.shape[1]
    a_pad = w3.shape[1]
    grid = (n_pad // tm,)
    kernel = functools.partial(dqn_mlp_kernel, bf16_epilogue=bf16_epilogue)
    return pl.pallas_call(
        kernel,
        out_shape=jax.ShapeDtypeStruct((n_pad, a_pad), jnp.float32),
        grid=grid,
        in_specs=[
            pl.BlockSpec((tm, f_pad), lambda i: (i, 0)),     # x: tiled over batch
            pl.BlockSpec((f_pad, h1), lambda i: (0, 0)),     # weights/biases stay
            pl.BlockSpec((h1, h2), lambda i: (0, 0)),        # VMEM-resident across
            pl.BlockSpec((1, h2), lambda i: (0, 0)),         # all grid steps
            pl.BlockSpec((h2, a_pad), lambda i: (0, 0)),
            pl.BlockSpec((1, a_pad), lambda i: (0, 0)),
        ],
        out_specs=pl.BlockSpec((tm, a_pad), lambda i: (i, 0)),  # lane-dense output
        compiler_params=pltpu.CompilerParams(
            dimension_semantics=("parallel",),               # v7x: shard batch tiles
        ),
    )(x_pad, w1, w2, b2, w3, b3)


# ----------------------------------------------------------------------------
# Parameter init (PyTorch nn.Linear-style uniform(-1/sqrt(fan_in))) + TPU prep
# ----------------------------------------------------------------------------
def init_dqn_params(key, input_shape, n_actions):
    """Unpadded f32 'master' params, (in_features, out_features) storage."""
    in_f = input_shape[0] * input_shape[1]
    dims = [(in_f, 512), (512, 128), (128, n_actions)]
    params = []
    for i, (fin, fout) in enumerate(dims):
        kw, kb = jax.random.split(jax.random.fold_in(key, i))
        bound = 1.0 / float(fin) ** 0.5
        w = jax.random.uniform(kw, (fin, fout), jnp.float32, -bound, bound)
        b = jax.random.uniform(kb, (1, fout), jnp.float32, -bound, bound)
        params += [w, b]
    return tuple(params)


def prepare_dqn_params(master, bf16_epilogue=None, two_cores=None):
    """Pad F (plus a bias row) and n_actions to 128 lanes; bf16 weights, fold b1."""
    if bf16_epilogue is None or two_cores is None:
        auto_bf16, auto_cores = _tpu_config()
        bf16_epilogue = auto_bf16 if bf16_epilogue is None else bf16_epilogue
        two_cores = auto_cores if two_cores is None else two_cores

    w1, b1, w2, b2, w3, b3 = master
    in_f = w1.shape[0]
    n_actions = w3.shape[1]
    f_pad = _round_up(in_f + 1, LANE)        # +1 guarantees a spare row for b1
    a_pad = _round_up(n_actions, LANE)

    w1p = jnp.zeros((f_pad, w1.shape[1]), jnp.float32)
    w1p = w1p.at[:in_f, :].set(w1)
    w1p = w1p.at[in_f, :].set(b1[0])         # b1 folded into the bias-marker row

    w3p = jnp.zeros((w3.shape[0], a_pad), jnp.float32).at[:, :n_actions].set(w3)
    b3p = jnp.zeros((1, a_pad), jnp.float32).at[:, :n_actions].set(b3)

    epi = jnp.bfloat16 if bf16_epilogue else jnp.float32
    kparams = (
        w1p.astype(jnp.bfloat16),
        w2.astype(jnp.bfloat16), b2.astype(epi),
        w3p.astype(jnp.bfloat16), b3p,       # b3 stays f32 (added to f32 output)
    )
    return {
        "kparams": kparams,
        "n_actions": n_actions,
        "in_features": in_f,
        "f_pad": f_pad,
        "bf16_epilogue": bf16_epilogue,
        "two_cores": two_cores,
    }


# ----------------------------------------------------------------------------
# Wrappers
# ----------------------------------------------------------------------------
def _pick_tm(n, two_cores):
    """Batch-tile size: big tiles to amortize grid overhead; >=2 tiles on v7x."""
    if n < LANE:
        return _round_up(max(n, 1), SUBLANE)
    tm_cap = 512                                   # h1 temp = TM*2KiB -> well in VMEM
    if two_cores:
        tm_cap = min(tm_cap, _round_up(-(-n // 2), SUBLANE))   # keep grid >= 2
    return min(tm_cap, _round_up(n, SUBLANE))


def dqn_mlp(x2d, prep):
    """x2d: (N, F) f32 -> (N, n_actions) f32 via the fused Pallas kernel."""
    n, f = x2d.shape
    f_pad = prep["f_pad"]
    in_f = prep["in_features"]
    n_actions = prep["n_actions"]

    tm = _pick_tm(n, prep["two_cores"])
    n_pad = _round_up(n, tm)

    # bf16 input tile (halves x DMA, removes in-kernel cast); marker column = 1.0
    # only for real rows so padded batch rows pick up no bias contribution.
    x_pad = jnp.zeros((n_pad, f_pad), jnp.bfloat16)
    x_pad = x_pad.at[:n, :f].set(x2d.astype(jnp.bfloat16))
    x_pad = x_pad.at[:n, in_f].set(jnp.ones((n,), jnp.bfloat16))

    out = _dqn_mlp_call(x_pad, *prep["kparams"], tm=tm,
                        bf16_epilogue=prep["bf16_epilogue"])
    return out[:n, :n_actions]


def dqn_forward(x, prep):
    """
    Mirrors DQN.forward:
      x: (B, H, W) with B != 4 -> (B, 1, n_actions)
      x: leading dim == 4 (e.g. (4, W)) -> single flattened sample -> (1, n_actions)
    # TODO(synk): the torch .cpu().numpy()/.cuda() round-trip is a host transfer with
    # no numeric effect; it is intentionally not reproduced.
    """
    x = jnp.asarray(x, jnp.float32)
    if x.shape[0] != 4:
        b = x.shape[0]
        flat = x.reshape(b, -1)                 # (B, F)
        out = dqn_mlp(flat, prep)               # (B, n_actions)
        return out.reshape(b, 1, -1)            # (B, 1, n_actions)
    else:
        flat = x.reshape(1, -1)                 # (1, F)
        return dqn_mlp(flat, prep)              # (1, n_actions)


# ----------------------------------------------------------------------------
# Pure-JAX reference mirroring the kernel numerics (bf16 MXU inputs, f32 acc,
# chip-dependent epilogue dtype, b1 folded as a bf16 row).
# ----------------------------------------------------------------------------
def dqn_ref(x2d, master, bf16_epilogue):
    w1, b1, w2, b2, w3, b3 = master
    epi = jnp.bfloat16 if bf16_epilogue else jnp.float32
    bf = lambda a: a.astype(jnp.bfloat16).astype(jnp.float32)

    a1 = (jnp.dot(bf(x2d), bf(w1)) + bf(b1)).astype(epi)
    h1 = jnp.maximum(a1, 0).astype(jnp.bfloat16).astype(jnp.float32)

    a2 = jnp.dot(h1, bf(w2)).astype(epi) + b2.astype(epi)
    h2 = jnp.maximum(a2, 0).astype(jnp.bfloat16).astype(jnp.float32)

    return jnp.dot(h2, bf(w3)) + b3


if __name__ == "__main__":
    key = jax.random.PRNGKey(0)

    input_shape = (8, 8)      # (H, W) -> F = 64 (padded to 128 incl. bias row)
    n_actions = 4             # padded to 128 lanes inside, sliced back to 4
    batch = 2                 # batch branch (x.shape[0] != 4)

    kp, kx = jax.random.split(key)
    master = init_dqn_params(kp, input_shape, n_actions)
    prep = prepare_dqn_params(master)
    bf16_epi = prep["bf16_epilogue"]

    # --- small inference batch (B=2) ---
    x = jax.random.normal(kx, (batch,) + input_shape, jnp.float32)
    out = jax.block_until_ready(dqn_forward(x, prep))
    assert out.shape == (batch, 1, n_actions), out.shape
    ref = dqn_ref(x.reshape(batch, -1), master, bf16_epi).reshape(batch, 1, n_actions)
    assert jnp.allclose(out, ref, atol=2e-2, rtol=2e-2), float(jnp.max(jnp.abs(out - ref)))

    # --- x.shape[0] == 4 branch: single flattened sample, input_shape (4, 8) ---
    master4 = init_dqn_params(kp, (4, 8), n_actions)
    prep4 = prepare_dqn_params(master4)
    x4 = jax.random.normal(jax.random.fold_in(kx, 1), (4, 8), jnp.float32)
    out4 = jax.block_until_ready(dqn_forward(x4, prep4))
    assert out4.shape == (1, n_actions), out4.shape
    ref4 = dqn_ref(x4.reshape(1, -1), master4, prep4["bf16_epilogue"])
    assert jnp.allclose(out4, ref4, atol=2e-2, rtol=2e-2)

    # --- training-size batch exercising the tiled grid ---
    xb = jax.random.normal(jax.random.fold_in(kx, 2), (256,) + input_shape, jnp.float32)
    outb = jax.block_until_ready(dqn_forward(xb, prep))
    assert outb.shape == (256, 1, n_actions), outb.shape
    refb = dqn_ref(xb.reshape(256, -1), master, bf16_epi).reshape(256, 1, n_actions)
    assert jnp.allclose(outb, refb, atol=2e-2, rtol=2e-2)

    print("KERNEL_OK")
</pallas_src>

<mosaic_0001>
module attributes {stable_mosaic.version = 11 : i64} {
  func.func @dqn_mlp_kernel(%arg0: i32, %arg1: memref<8x128xbf16, #tpu.memory_space<vmem>>, %arg2: memref<128x512xbf16, #tpu.memory_space<vmem>>, %arg3: memref<512x128xbf16, #tpu.memory_space<vmem>>, %arg4: memref<1x128xf32, #tpu.memory_space<vmem>>, %arg5: memref<128x128xbf16, #tpu.memory_space<vmem>>, %arg6: memref<1x128xf32, #tpu.memory_space<vmem>>, %arg7: memref<8x128xf32, #tpu.memory_space<vmem>>) attributes {dimension_semantics = [#tpu.dimension_semantics<parallel>], iteration_bounds = array<i64: 1>, scalar_prefetch = 0 : i64, scratch_operands = 0 : i64, tpu.core_type = #tpu.core_type<tc>, window_params = [{transform_indices = @transform_0, window_bounds = array<i64: 8, 128>}, {pipeline_mode = #tpu.pipeline_mode<synchronous>, transform_indices = @transform_1, window_bounds = array<i64: 128, 512>}, {pipeline_mode = #tpu.pipeline_mode<synchronous>, transform_indices = @transform_2, window_bounds = array<i64: 512, 128>}, {pipeline_mode = #tpu.pipeline_mode<synchronous>, transform_indices = @transform_3, window_bounds = array<i64: 1, 128>}, {pipeline_mode = #tpu.pipeline_mode<synchronous>, transform_indices = @transform_4, window_bounds = array<i64: 128, 128>}, {pipeline_mode = #tpu.pipeline_mode<synchronous>, transform_indices = @transform_5, window_bounds = array<i64: 1, 128>}, {transform_indices = @transform_6, window_bounds = array<i64: 8, 128>}]} {
    %c0 = arith.constant 0 : index
    %c0_0 = arith.constant 0 : index
    %0 = vector.load %arg1[%c0, %c0_0] : memref<8x128xbf16, #tpu.memory_space<vmem>>, vector<8x128xbf16>
    %c0_1 = arith.constant 0 : index
    %c0_2 = arith.constant 0 : index
    %1 = vector.load %arg2[%c0_1, %c0_2] : memref<128x512xbf16, #tpu.memory_space<vmem>>, vector<128x512xbf16>
    %cst = arith.constant dense<0.000000e+00> : vector<8x512xf32>
    %2 = tpu.matmul %0, %1, %cst {dimension_numbers = #tpu.dot_dimension_numbers<[1], [0], [0], [1], [0, 0, 1, 1], [], []>} : vector<8x128xbf16>, vector<128x512xbf16>, vector<8x512xf32> -> vector<8x512xf32>
    %cst_3 = arith.constant 0.000000e+00 : f32
    %3 = vector.broadcast %cst_3 : f32 to vector<8x512xf32>
    %4 = arith.maximumf %2, %3 : vector<8x512xf32>
    %5 = arith.truncf %4 : vector<8x512xf32> to vector<8x512xbf16>
    %c0_4 = arith.constant 0 : index
    %c0_5 = arith.constant 0 : index
    %6 = vector.load %arg3[%c0_4, %c0_5] : memref<512x128xbf16, #tpu.memory_space<vmem>>, vector<512x128xbf16>
    %cst_6 = arith.constant dense<0.000000e+00> : vector<8x128xf32>
    %7 = tpu.matmul %5, %6, %cst_6 {dimension_numbers = #tpu.dot_dimension_numbers<[1], [0], [0], [1], [0, 0, 1, 1], [], []>} : vector<8x512xbf16>, vector<512x128xbf16>, vector<8x128xf32> -> vector<8x128xf32>
    %c0_7 = arith.constant 0 : index
    %c0_8 = arith.constant 0 : index
    %8 = vector.load %arg4[%c0_7, %c0_8] : memref<1x128xf32, #tpu.memory_space<vmem>>, vector<1x128xf32>
    %9 = vector.broadcast %8 : vector<1x128xf32> to vector<8x128xf32>
    %10 = arith.addf %7, %9 : vector<8x128xf32>
    %cst_9 = arith.constant 0.000000e+00 : f32
    %11 = vector.broadcast %cst_9 : f32 to vector<8x128xf32>
    %12 = arith.maximumf %10, %11 : vector<8x128xf32>
    %13 = arith.truncf %12 : vector<8x128xf32> to vector<8x128xbf16>
    %c0_10 = arith.constant 0 : index
    %c0_11 = arith.constant 0 : index
    %14 = vector.load %arg5[%c0_10, %c0_11] : memref<128x128xbf16, #tpu.memory_space<vmem>>, vector<128x128xbf16>
    %cst_12 = arith.constant dense<0.000000e+00> : vector<8x128xf32>
    %15 = tpu.matmul %13, %14, %cst_12 {dimension_numbers = #tpu.dot_dimension_numbers<[1], [0], [0], [1], [0, 0, 1, 1], [], []>} : vector<8x128xbf16>, vector<128x128xbf16>, vector<8x128xf32> -> vector<8x128xf32>
    %c0_13 = arith.constant 0 : index
    %c0_14 = arith.constant 0 : index
    %16 = vector.load %arg6[%c0_13, %c0_14] : memref<1x128xf32, #tpu.memory_space<vmem>>, vector<1x128xf32>
    %17 = vector.broadcast %16 : vector<1x128xf32> to vector<8x128xf32>
    %18 = arith.addf %15, %17 : vector<8x128xf32>
    %c0_15 = arith.constant 0 : index
    %c0_16 = arith.constant 0 : index
    %19 = vector.load %arg7[%c0_15, %c0_16] : memref<8x128xf32, #tpu.memory_space<vmem>>, vector<8x128xf32>
    tpu.vector_store %arg7[%c0_15, %c0_16], %18 {strides = array<i32>} : memref<8x128xf32, #tpu.memory_space<vmem>>, vector<8x128xf32>,
    return
  }
  func.func @transform_0(%arg0: i32) -> (i32, i32) {
    %c0_i32 = arith.constant 0 : i32
    %c0_i32_0 = arith.constant 0 : i32
    return %arg0, %c0_i32 : i32, i32
  }
  func.func @transform_1(%arg0: i32) -> (i32, i32) {
    %c0_i32 = arith.constant 0 : i32
    %c0_i32_0 = arith.constant 0 : i32
    %c0_i32_1 = arith.constant 0 : i32
    return %c0_i32, %c0_i32_0 : i32, i32
  }
  func.func @transform_2(%arg0: i32) -> (i32, i32) {
    %c0_i32 = arith.constant 0 : i32
    %c0_i32_0 = arith.constant 0 : i32
    %c0_i32_1 = arith.constant 0 : i32
    return %c0_i32, %c0_i32_0 : i32, i32
  }
  func.func @transform_3(%arg0: i32) -> (i32, i32) {
    %c0_i32 = arith.constant 0 : i32
    %c0_i32_0 = arith.constant 0 : i32
    %c0_i32_1 = arith.constant 0 : i32
    return %c0_i32, %c0_i32_0 : i32, i32
  }
  func.func @transform_4(%arg0: i32) -> (i32, i32) {
    %c0_i32 = arith.constant 0 : i32
    %c0_i32_0 = arith.constant 0 : i32
    %c0_i32_1 = arith.constant 0 : i32
    return %c0_i32, %c0_i32_0 : i32, i32
  }
  func.func @transform_5(%arg0: i32) -> (i32, i32) {
    %c0_i32 = arith.constant 0 : i32
    %c0_i32_0 = arith.constant 0 : i32
    %c0_i32_1 = arith.constant 0 : i32
    return %c0_i32, %c0_i32_0 : i32, i32
  }
  func.func @transform_6(%arg0: i32) -> (i32, i32) {
    %c0_i32 = arith.constant 0 : i32
    %c0_i32_0 = arith.constant 0 : i32
    return %arg0, %c0_i32 : i32, i32
  }
}

</mosaic_0001>

<llo_original>
// kernel: _dqn_mlp_call.1
$region0: #{_dqn_mlp_call.1}
  #allocation0 [shape = 'u32[]', space=smem, size = 0x4, offset = 0x4, fixed_abs, tag = 'smem constant byte address 0x4 - core index']
  #allocation1 [shape = 'u32[144,128]{1,0:T(1,128)}', space=vmem, size = 0x12000, scoped, tag = 'internal scratch']
  %s0 = inlined_call_operand.hbm [shape: bf16[8,128], index: 0, kind: input, shape index: {}]
  %s1 = inlined_call_operand.hbm [shape: bf16[128,512], index: 1, kind: input, shape index: {}]
  %s2 = inlined_call_operand.hbm [shape: bf16[512,128], index: 2, kind: input, shape index: {}]
  %s3 = inlined_call_operand.vmem [shape: f32[1,128], index: 3, kind: input, shape index: {}]
  %s4 = inlined_call_operand.hbm [shape: bf16[128,128], index: 4, kind: input, shape index: {}]
  %s5 = inlined_call_operand.vmem [shape: f32[1,128], index: 5, kind: input, shape index: {}]
  %s6 = inlined_call_operand.hbm [shape: f32[8,128], index: 6, kind: output, shape index: {}]
  %s7 = sld [smem:[#allocation0]]
  $region50: #{_dqn_mlp_call.1} parent=0
    _
  %s9 = ssub.s32 1, %s7
  %s10 = scalar_select 0, %s9, %s7
  $region1: #{_dqn_mlp_call.1} parent=0
    #allocation2 [shape = 'u8[2048]{0}', space=vmem, size = 0x800, scoped, tag = 'input window, operand 0, single buffered']
    #allocation3 [shape = 's32[1]{0}', space=sflag, size = 0x4, scoped, tag = 'scoped memory for _dqn_mlp_call.1']
    #allocation4 [shape = 's32[1]{0}', space=sflag, size = 0x4, scoped, tag = 'scoped memory for _dqn_mlp_call.1']
    #allocation5 [shape = 'u8[131072]{0}', space=vmem, size = 0x20000, scoped, tag = 'input window, operand 1, single buffered']
    #allocation6 [shape = 's32[1]{0}', space=sflag, size = 0x4, scoped, tag = 'scoped memory for _dqn_mlp_call.1']
    #allocation7 [shape = 'u8[131072]{0}', space=vmem, size = 0x20000, scoped, tag = 'input window, operand 2, single buffered']
    #allocation8 [shape = 'u8[32768]{0}', space=vmem, size = 0x8000, scoped, tag = 'input window, operand 4, single buffered']
    #allocation9 [shape = 's32[1]{0}', space=sflag, size = 0x4, scoped, tag = 'scoped memory for _dqn_mlp_call.1']
    #allocation10 [shape = 'u8[4096]{0}', space=vmem, size = 0x1000, scoped, tag = 'output window, operand 0, single buffered']
    %11 = vsyncpa [#allocation3], 0
    %12 = vsyncpa [#allocation6], 0
    %13 = vsyncpa [#allocation9], 0
    %14 = vsyncpa [#allocation4], 0
    // Predicated region
    $region2: #{_dqn_mlp_call.1} parent=1 // pred_check
      _
    $region3: #{_dqn_mlp_call.1} parent=1 // pred_check_branch
      %16 = sbr.rel (0) target = $region5
    $region4: #{_dqn_mlp_call.1} parent=1 // pred_region
      %s18 = ssub.s32 64, 64
      %19 = vsyncadd [#allocation3], %s18
      %s21 = sshll.u32 [#allocation2], 4
      %s22 = int_to_ptr.vmem [resolvable:$true] %s21
      %24 = dma.hbm_to_vmem [thread:$0]  %s0, 64, %s22, [#allocation3]
    $region5: #{_dqn_mlp_call.1} parent=1 // pred_fallthru
      _
    // Predicated region
    $region6: #{_dqn_mlp_call.1} parent=1 // pred_check
      _
    $region7: #{_dqn_mlp_call.1} parent=1 // pred_check_branch
      %26 = sbr.rel (0) target = $region9
    $region8: #{_dqn_mlp_call.1} parent=1 // pred_region
      %s28 = ssub.s32 4096, 4096
      %29 = vsyncadd [#allocation6], %s28
      %s30 = sshll.u32 [#allocation5], 4
      %s31 = int_to_ptr.vmem [resolvable:$true] %s30
      %36 = dma.hbm_to_vmem [thread:$0]  %s1, 4096, %s31, [#allocation6], 256, 256, 16
    $region9: #{_dqn_mlp_call.1} parent=1 // pred_fallthru
      _
    // Predicated region
    $region10: #{_dqn_mlp_call.1} parent=1 // pred_check
      _
    $region11: #{_dqn_mlp_call.1} parent=1 // pred_check_branch
      %38 = sbr.rel (0) target = $region13
    $region12: #{_dqn_mlp_call.1} parent=1 // pred_region
      %s40 = ssub.s32 4096, 4096
      %41 = vsyncadd [#allocation6], %s40
      %s42 = sshll.u32 [#allocation7], 4
      %s43 = int_to_ptr.vmem [resolvable:$true] %s42
      %48 = dma.hbm_to_vmem [thread:$0]  %s2, 4096, %s43, [#allocation6], 64, 64, 4
    $region13: #{_dqn_mlp_call.1} parent=1 // pred_fallthru
      _
    // Predicated region
    $region14: #{_dqn_mlp_call.1} parent=1 // pred_check
      _
    $region15: #{_dqn_mlp_call.1} parent=1 // pred_check_branch
      %50 = sbr.rel (0) target = $region17
    $region16: #{_dqn_mlp_call.1} parent=1 // pred_region
      _
    $region17: #{_dqn_mlp_call.1} parent=1 // pred_fallthru
      _
    // Predicated region
    $region18: #{_dqn_mlp_call.1} parent=1 // pred_check
      _
    $region19: #{_dqn_mlp_call.1} parent=1 // pred_check_branch
      %52 = sbr.rel (0) target = $region21
    $region20: #{_dqn_mlp_call.1} parent=1 // pred_region
      %s54 = ssub.s32 1024, 1024
      %55 = vsyncadd [#allocation9], %s54
      %s56 = sshll.u32 [#allocation8], 4
      %s57 = int_to_ptr.vmem [resolvable:$true] %s56
      %62 = dma.hbm_to_vmem [thread:$0]  %s4, 1024, %s57, [#allocation9], 64, 64, 4
    $region21: #{_dqn_mlp_call.1} parent=1 // pred_fallthru
      _
    // Predicated region
    $region22: #{_dqn_mlp_call.1} parent=1 // pred_check
      _
    $region23: #{_dqn_mlp_call.1} parent=1 // pred_check_branch
      %64 = sbr.rel (0) target = $region25
    $region24: #{_dqn_mlp_call.1} parent=1 // pred_region
      _
    $region25: #{_dqn_mlp_call.1} parent=1 // pred_fallthru
      _
    // Predicated region
    $region26: #{_dqn_mlp_call.1} parent=1 // pred_check
      _
    $region27: #{_dqn_mlp_call.1} parent=1 // pred_check_branch
      %66 = sbr.rel (0) target = $region29
    $region28: #{_dqn_mlp_call.1} parent=1 // pred_region
      %67 = dma.done [#allocation3], 64
    $region29: #{_dqn_mlp_call.1} parent=1 // pred_fallthru
      _
    // Predicated region
    $region30: #{_dqn_mlp_call.1} parent=1 // pred_check
      _
    $region31: #{_dqn_mlp_call.1} parent=1 // pred_check_branch
      %69 = sbr.rel (0) target = $region33
    $region32: #{_dqn_mlp_call.1} parent=1 // pred_region
      %70 = dma.done [#allocation6], 4096
    $region33: #{_dqn_mlp_call.1} parent=1 // pred_fallthru
      _
    // Predicated region
    $region34: #{_dqn_mlp_call.1} parent=1 // pred_check
      _
    $region35: #{_dqn_mlp_call.1} parent=1 // pred_check_branch
      %72 = sbr.rel (0) target = $region37
    $region36: #{_dqn_mlp_call.1} parent=1 // pred_region
      %73 = dma.done [#allocation6], 4096
    $region37: #{_dqn_mlp_call.1} parent=1 // pred_fallthru
      _
    // Predicated region
    $region38: #{_dqn_mlp_call.1} parent=1 // pred_check
      _
    $region39: #{_dqn_mlp_call.1} parent=1 // pred_check_branch
      %75 = sbr.rel (0) target = $region41
    $region40: #{_dqn_mlp_call.1} parent=1 // pred_region
      %76 = dma.done [#allocation9], 1024
    $region41: #{_dqn_mlp_call.1} parent=1 // pred_fallthru
      _
    %v78 = vld [vmem:[#allocation2] sm:$0xf]
    %v79 = vld [vmem:[#allocation5] sm:$0xff]
    %v80 = vld [vmem:[#allocation5 + $0x8] sm:$0xff]
    %v81 = vld [vmem:[#allocation5 + $0x10] sm:$0xff]
    %v82 = vld [vmem:[#allocation5 + $0x18] sm:$0xff]
    %v83 = vld [vmem:[#allocation5 + $0x20] sm:$0xff]
    %v84 = vld [vmem:[#allocation5 + $0x28] sm:$0xff]
    %v85 = vld [vmem:[#allocation5 + $0x30] sm:$0xff]
    %v86 = vld [vmem:[#allocation5 + $0x38] sm:$0xff]
    %v87 = vld [vmem:[#allocation5 + $0x40] sm:$0xff]
    %v88 = vld [vmem:[#allocation5 + $0x48] sm:$0xff]
    %v89 = vld [vmem:[#allocation5 + $0x50] sm:$0xff]
    %v90 = vld [vmem:[#allocation5 + $0x58] sm:$0xff]
    %v91 = vld [vmem:[#allocation5 + $0x60] sm:$0xff]
    %v92 = vld [vmem:[#allocation5 + $0x68] sm:$0xff]
    %v93 = vld [vmem:[#allocation5 + $0x70] sm:$0xff]
    %v94 = vld [vmem:[#allocation5 + $0x78] sm:$0xff]
    %v95 = vld [vmem:[#allocation5 + $0x80] sm:$0xff]
    %v96 = vld [vmem:[#allocation5 + $0x88] sm:$0xff]
    %v97 = vld [vmem:[#allocation5 + $0x90] sm:$0xff]
    %v98 = vld [vmem:[#allocation5 + $0x98] sm:$0xff]
    %v99 = vld [vmem:[#allocation5 + $0xa0] sm:$0xff]
    %v100 = vld [vmem:[#allocation5 + $0xa8] sm:$0xff]
    %v101 = vld [vmem:[#allocation5 + $0xb0] sm:$0xff]
    %v102 = vld [vmem:[#allocation5 + $0xb8] sm:$0xff]
    %v103 = vld [vmem:[#allocation5 + $0xc0] sm:$0xff]
    %v104 = vld [vmem:[#allocation5 + $0xc8] sm:$0xff]
    %v105 = vld [vmem:[#allocation5 + $0xd0] sm:$0xff]
    %v106 = vld [vmem:[#allocation5 + $0xd8] sm:$0xff]
    %v107 = vld [vmem:[#allocation5 + $0xe0] sm:$0xff]
    %v108 = vld [vmem:[#allocation5 + $0xe8] sm:$0xff]
    %v109 = vld [vmem:[#allocation5 + $0xf0] sm:$0xff]
    %v110 = vld [vmem:[#allocation5 + $0xf8] sm:$0xff]
    %v143 = vunpack.c.l.b16 %v79
    %v144 = vunpack.c.h.b16 %v79
    %v145 = vunpack.c.l.b16 %v80
    %v146 = vunpack.c.h.b16 %v80
    %v147 = vunpack.c.l.b16 %v81
    %v148 = vunpack.c.h.b16 %v81
    %v149 = vunpack.c.l.b16 %v82
    %v150 = vunpack.c.h.b16 %v82
    %v151 = vunpack.c.l.b16 %v83
    %v152 = vunpack.c.h.b16 %v83
    %v153 = vunpack.c.l.b16 %v84
    %v154 = vunpack.c.h.b16 %v84
    %v155 = vunpack.c.l.b16 %v85
    %v156 = vunpack.c.h.b16 %v85
    %v157 = vunpack.c.l.b16 %v86
    %v158 = vunpack.c.h.b16 %v86
    %v159 = vunpack.c.l.b16 %v87
    %v160 = vunpack.c.h.b16 %v87
    %v161 = vunpack.c.l.b16 %v88
    %v162 = vunpack.c.h.b16 %v88
    %v163 = vunpack.c.l.b16 %v89
    %v164 = vunpack.c.h.b16 %v89
    %v165 = vunpack.c.l.b16 %v90
    %v166 = vunpack.c.h.b16 %v90
    %v167 = vunpack.c.l.b16 %v91
    %v168 = vunpack.c.h.b16 %v91
    %v169 = vunpack.c.l.b16 %v92
    %v170 = vunpack.c.h.b16 %v92
    %v171 = vunpack.c.l.b16 %v93
    %v172 = vunpack.c.h.b16 %v93
    %v173 = vunpack.c.l.b16 %v94
    %v174 = vunpack.c.h.b16 %v94
    %v175 = vunpack.c.l.b16 %v95
    %v176 = vunpack.c.h.b16 %v95
    %v177 = vunpack.c.l.b16 %v96
    %v178 = vunpack.c.h.b16 %v96
    %v179 = vunpack.c.l.b16 %v97
    %v180 = vunpack.c.h.b16 %v97
    %v181 = vunpack.c.l.b16 %v98
    %v182 = vunpack.c.h.b16 %v98
    %v183 = vunpack.c.l.b16 %v99
    %v184 = vunpack.c.h.b16 %v99
    %v185 = vunpack.c.l.b16 %v100
    %v186 = vunpack.c.h.b16 %v100
    %v187 = vunpack.c.l.b16 %v101
    %v188 = vunpack.c.h.b16 %v101
    %v189 = vunpack.c.l.b16 %v102
    %v190 = vunpack.c.h.b16 %v102
    %v191 = vunpack.c.l.b16 %v103
    %v192 = vunpack.c.h.b16 %v103
    %v193 = vunpack.c.l.b16 %v104
    %v194 = vunpack.c.h.b16 %v104
    %v195 = vunpack.c.l.b16 %v105
    %v196 = vunpack.c.h.b16 %v105
    %v197 = vunpack.c.l.b16 %v106
    %v198 = vunpack.c.h.b16 %v106
    %v199 = vunpack.c.l.b16 %v107
    %v200 = vunpack.c.h.b16 %v107
    %v201 = vunpack.c.l.b16 %v108
    %v202 = vunpack.c.h.b16 %v108
    %v203 = vunpack.c.l.b16 %v109
    %v204 = vunpack.c.h.b16 %v109
    %v205 = vunpack.c.l.b16 %v110
    %v206 = vunpack.c.h.b16 %v110
    %v207 = vpack.c.b16 %v147, %v143
    %v208 = vpack.c.b16 %v148, %v144
    %v209 = vpack.c.b16 %v149, %v145
    %v210 = vpack.c.b16 %v150, %v146
    %v211 = vpack.c.b16 %v155, %v151
    %v212 = vpack.c.b16 %v156, %v152
    %v213 = vpack.c.b16 %v157, %v153
    %v214 = vpack.c.b16 %v158, %v154
    %v215 = vpack.c.b16 %v163, %v159
    %v216 = vpack.c.b16 %v164, %v160
    %v217 = vpack.c.b16 %v165, %v161
    %v218 = vpack.c.b16 %v166, %v162
    %v219 = vpack.c.b16 %v171, %v167
    %v220 = vpack.c.b16 %v172, %v168
    %v221 = vpack.c.b16 %v173, %v169
    %v222 = vpack.c.b16 %v174, %v170
    %v223 = vpack.c.b16 %v179, %v175
    %v224 = vpack.c.b16 %v180, %v176
    %v225 = vpack.c.b16 %v181, %v177
    %v226 = vpack.c.b16 %v182, %v178
    %v227 = vpack.c.b16 %v187, %v183
    %v228 = vpack.c.b16 %v188, %v184
    %v229 = vpack.c.b16 %v189, %v185
    %v230 = vpack.c.b16 %v190, %v186
    %v231 = vpack.c.b16 %v195, %v191
    %v232 = vpack.c.b16 %v196, %v192
    %v233 = vpack.c.b16 %v197, %v193
    %v234 = vpack.c.b16 %v198, %v194
    %v235 = vpack.c.b16 %v203, %v199
    %v236 = vpack.c.b16 %v204, %v200
    %v237 = vpack.c.b16 %v205, %v201
    %v238 = vpack.c.b16 %v206, %v202
    %271 = vmatprep.subr.bf16.mxu0 %v208
    %272 = vmatpush1.bf16.msra.mxu0 %v207
    %273 = vmatprep.subr.bf16.mxu0 %v212
    %274 = vmatpush1.bf16.msra.mxu0 %v211
    %275 = vmatprep.subr.bf16.mxu0 %v216
    %276 = vmatpush1.bf16.msra.mxu0 %v215
    %277 = vmatprep.subr.bf16.mxu0 %v220
    %278 = vmatpush1.bf16.msra.mxu0 %v219
    %279 = vmatprep.subr.bf16.mxu0 %v224
    %280 = vmatpush1.bf16.msra.mxu0 %v223
    %281 = vmatprep.subr.bf16.mxu0 %v228
    %282 = vmatpush1.bf16.msra.mxu0 %v227
    %283 = vmatprep.subr.bf16.mxu0 %v232
    %284 = vmatpush1.bf16.msra.mxu0 %v231
    %285 = vmatprep.subr.bf16.mxu0 %v236
    %286 = vmatpush1.bf16.msra.mxu0 %v235
    %287 = vmatprep.subr.bf16.mxu0 0
    %288 = vmatpush1.bf16.msra.mxu0 0
    %289 = vmatprep.subr.bf16.mxu0 0
    %290 = vmatpush1.bf16.msra.mxu0 0
    %291 = vmatprep.subr.bf16.mxu0 0
    %292 = vmatpush1.bf16.msra.mxu0 0
    %293 = vmatprep.subr.bf16.mxu0 0
    %294 = vmatpush1.bf16.msra.mxu0 0
    %295 = vmatprep.subr.bf16.mxu0 0
    %296 = vmatpush1.bf16.msra.mxu0 0
    %297 = vmatprep.subr.bf16.mxu0 0
    %298 = vmatpush1.bf16.msra.mxu0 0
    %299 = vmatprep.subr.bf16.mxu0 0
    %300 = vmatpush1.bf16.msra.mxu0 0
    %301 = vmatprep.subr.bf16.mxu0 0
    %302 = vmatpush1.bf16.msra.mxu0 0
    %303 = vmatprep.mubr.bf16.mxu0 0
    %304 = vmatmul.mubr.bf16.gmra.mrb[0].mxu0 %v78
    %v305 = vpop.f32.mrb[0].mxu0
    %v306 = vadd.f32 0.0, %v305
    %v307 = vpop.f32.mrb[0].mxu0
    %v308 = vadd.f32 0.0, %v307
    %v309 = vpop.f32.mrb[0].mxu0
    %v310 = vpop.f32.mrb[0].mxu0
    %311 = vdwg.mxu0
    %312 = vmatprep.subr.bf16.mxu0 %v210
    %313 = vmatpush1.bf16.msra.mxu0 %v209
    %314 = vmatprep.subr.bf16.mxu0 %v214
    %315 = vmatpush1.bf16.msra.mxu0 %v213
    %316 = vmatprep.subr.bf16.mxu0 %v218
    %317 = vmatpush1.bf16.msra.mxu0 %v217
    %318 = vmatprep.subr.bf16.mxu0 %v222
    %319 = vmatpush1.bf16.msra.mxu0 %v221
    %320 = vmatprep.subr.bf16.mxu0 %v226
    %321 = vmatpush1.bf16.msra.mxu0 %v225
    %322 = vmatprep.subr.bf16.mxu0 %v230
    %323 = vmatpush1.bf16.msra.mxu0 %v229
    %324 = vmatprep.subr.bf16.mxu0 %v234
    %325 = vmatpush1.bf16.msra.mxu0 %v233
    %326 = vmatprep.subr.bf16.mxu0 %v238
    %327 = vmatpush1.bf16.msra.mxu0 %v237
    %328 = vmatprep.subr.bf16.mxu0 0
    %329 = vmatpush1.bf16.msra.mxu0 0
    %330 = vmatprep.subr.bf16.mxu0 0
    %331 = vmatpush1.bf16.msra.mxu0 0
    %332 = vmatprep.subr.bf16.mxu0 0
    %333 = vmatpush1.bf16.msra.mxu0 0
    %334 = vmatprep.subr.bf16.mxu0 0
    %335 = vmatpush1.bf16.msra.mxu0 0
    %336 = vmatprep.subr.bf16.mxu0 0
    %337 = vmatpush1.bf16.msra.mxu0 0
    %338 = vmatprep.subr.bf16.mxu0 0
    %339 = vmatpush1.bf16.msra.mxu0 0
    %340 = vmatprep.subr.bf16.mxu0 0
    %341 = vmatpush1.bf16.msra.mxu0 0
    %342 = vmatprep.subr.bf16.mxu0 0
    %343 = vmatpush1.bf16.msra.mxu0 0
    %344 = vmatprep.mubr.bf16.mxu0 0
    %345 = vmatmul.mubr.bf16.gmra.mrb[0].mxu0 %v78
    %v346 = vpop.f32.mrb[0].mxu0
    %v347 = vadd.f32 0.0, %v346
    %v348 = vpop.f32.mrb[0].mxu0
    %v349 = vadd.f32 0.0, %v348
    %v350 = vpop.f32.mrb[0].mxu0
    %v351 = vpop.f32.mrb[0].mxu0
    %352 = vdwg.mxu0
    %v353 = vmax.f32 %v306, 0.0
    %v354 = vmax.f32 %v308, 0.0
    %v355 = vmax.f32 %v347, 0.0
    %v356 = vmax.f32 %v349, 0.0
    %v357 = vpack.c.bf16 %v353, %v353
    %v358 = vpack.c.bf16 %v354, %v354
    %v359 = vpack.c.bf16 %v355, %v355
    %v360 = vpack.c.bf16 %v356, %v356
    %v361 = vld [vmem:[#allocation7] sm:$0xf]
    %v362 = vld [vmem:[#allocation7 + $0x4] sm:$0xf]
    %v363 = vld [vmem:[#allocation7 + $0x8] sm:$0xf]
    %v364 = vld [vmem:[#allocation7 + $0xc] sm:$0xf]
    %v365 = vld [vmem:[#allocation7 + $0x10] sm:$0xf]
    %v366 = vld [vmem:[#allocation7 + $0x14] sm:$0xf]
    %v367 = vld [vmem:[#allocation7 + $0x18] sm:$0xf]
    %v368 = vld [vmem:[#allocation7 + $0x1c] sm:$0xf]
    %v369 = vld [vmem:[#allocation7 + $0x20] sm:$0xf]
    %v370 = vld [vmem:[#allocation7 + $0x24] sm:$0xf]
    %v371 = vld [vmem:[#allocation7 + $0x28] sm:$0xf]
    %v372 = vld [vmem:[#allocation7 + $0x2c] sm:$0xf]
    %v373 = vld [vmem:[#allocation7 + $0x30] sm:$0xf]
    %v374 = vld [vmem:[#allocation7 + $0x34] sm:$0xf]
    %v375 = vld [vmem:[#allocation7 + $0x38] sm:$0xf]
    %v376 = vld [vmem:[#allocation7 + $0x3c] sm:$0xf]
    %v377 = vld [vmem:[#allocation7 + $0x40] sm:$0xf]
    %v378 = vld [vmem:[#allocation7 + $0x44] sm:$0xf]
    %v379 = vld [vmem:[#allocation7 + $0x48] sm:$0xf]
    %v380 = vld [vmem:[#allocation7 + $0x4c] sm:$0xf]
    %v381 = vld [vmem:[#allocation7 + $0x50] sm:$0xf]
    %v382 = vld [vmem:[#allocation7 + $0x54] sm:$0xf]
    %v383 = vld [vmem:[#allocation7 + $0x58] sm:$0xf]
    %v384 = vld [vmem:[#allocation7 + $0x5c] sm:$0xf]
    %v385 = vld [vmem:[#allocation7 + $0x60] sm:$0xf]
    %v386 = vld [vmem:[#allocation7 + $0x64] sm:$0xf]
    %v387 = vld [vmem:[#allocation7 + $0x68] sm:$0xf]
    %v388 = vld [vmem:[#allocation7 + $0x6c] sm:$0xf]
    %v389 = vld [vmem:[#allocation7 + $0x70] sm:$0xf]
    %v390 = vld [vmem:[#allocation7 + $0x74] sm:$0xf]
    %v391 = vld [vmem:[#allocation7 + $0x78] sm:$0xf]
    %v392 = vld [vmem:[#allocation7 + $0x7c] sm:$0xf]
    %v393 = vld [vmem:[#allocation7 + $0x80] sm:$0xf]
    %v394 = vld [vmem:[#allocation7 + $0x84] sm:$0xf]
    %v395 = vld [vmem:[#allocation7 + $0x88] sm:$0xf]
    %v396 = vld [vmem:[#allocation7 + $0x8c] sm:$0xf]
    %v397 = vld [vmem:[#allocation7 + $0x90] sm:$0xf]
    %v398 = vld [vmem:[#allocation7 + $0x94] sm:$0xf]
    %v399 = vld [vmem:[#allocation7 + $0x98] sm:$0xf]
    %v400 = vld [vmem:[#allocation7 + $0x9c] sm:$0xf]
    %v401 = vld [vmem:[#allocation7 + $0xa0] sm:$0xf]
    %v402 = vld [vmem:[#allocation7 + $0xa4] sm:$0xf]
    %v403 = vld [vmem:[#allocation7 + $0xa8] sm:$0xf]
    %v404 = vld [vmem:[#allocation7 + $0xac] sm:$0xf]
    %v405 = vld [vmem:[#allocation7 + $0xb0] sm:$0xf]
    %v406 = vld [vmem:[#allocation7 + $0xb4] sm:$0xf]
    %v407 = vld [vmem:[#allocation7 + $0xb8] sm:$0xf]
    %v408 = vld [vmem:[#allocation7 + $0xbc] sm:$0xf]
    %v409 = vld [vmem:[#allocation7 + $0xc0] sm:$0xf]
    %v410 = vld [vmem:[#allocation7 + $0xc4] sm:$0xf]
    %v411 = vld [vmem:[#allocation7 + $0xc8] sm:$0xf]
    %v412 = vld [vmem:[#allocation7 + $0xcc] sm:$0xf]
    %v413 = vld [vmem:[#allocation7 + $0xd0] sm:$0xf]
    %v414 = vld [vmem:[#allocation7 + $0xd4] sm:$0xf]
    %v415 = vld [vmem:[#allocation7 + $0xd8] sm:$0xf]
    %v416 = vld [vmem:[#allocation7 + $0xdc] sm:$0xf]
    %v417 = vld [vmem:[#allocation7 + $0xe0] sm:$0xf]
    %v418 = vld [vmem:[#allocation7 + $0xe4] sm:$0xf]
    %v419 = vld [vmem:[#allocation7 + $0xe8] sm:$0xf]
    %v420 = vld [vmem:[#allocation7 + $0xec] sm:$0xf]
    %v421 = vld [vmem:[#allocation7 + $0xf0] sm:$0xf]
    %v422 = vld [vmem:[#allocation7 + $0xf4] sm:$0xf]
    %v423 = vld [vmem:[#allocation7 + $0xf8] sm:$0xf]
    %v424 = vld [vmem:[#allocation7 + $0xfc] sm:$0xf]
    %v425 = vld [vmem:[%s3] sm:$0x1]
    %v427 = vlaneseq
    %v428 = vshrl.u32 %v427, 7
    %v429 = vsub.s32 0, %v428
    %v430 = vrot.slane %v425, %v429
    %v496 = vunpack.c.l.b16 %v361
    %v497 = vunpack.c.l.b16 %v362
    %v498 = vunpack.c.l.b16 %v363
    %v499 = vunpack.c.l.b16 %v364
    %v500 = vunpack.c.l.b16 %v365
    %v501 = vunpack.c.l.b16 %v366
    %v502 = vunpack.c.l.b16 %v367
    %v503 = vunpack.c.l.b16 %v368
    %v504 = vunpack.c.l.b16 %v369
    %v505 = vunpack.c.l.b16 %v370
    %v506 = vunpack.c.l.b16 %v371
    %v507 = vunpack.c.l.b16 %v372
    %v508 = vunpack.c.l.b16 %v373
    %v509 = vunpack.c.l.b16 %v374
    %v510 = vunpack.c.l.b16 %v375
    %v511 = vunpack.c.l.b16 %v376
    %v512 = vunpack.c.l.b16 %v377
    %v513 = vunpack.c.l.b16 %v378
    %v514 = vunpack.c.l.b16 %v379
    %v515 = vunpack.c.l.b16 %v380
    %v516 = vunpack.c.l.b16 %v381
    %v517 = vunpack.c.l.b16 %v382
    %v518 = vunpack.c.l.b16 %v383
    %v519 = vunpack.c.l.b16 %v384
    %v520 = vunpack.c.l.b16 %v385
    %v521 = vunpack.c.l.b16 %v386
    %v522 = vunpack.c.l.b16 %v387
    %v523 = vunpack.c.l.b16 %v388
    %v524 = vunpack.c.l.b16 %v389
    %v525 = vunpack.c.l.b16 %v390
    %v526 = vunpack.c.l.b16 %v391
    %v527 = vunpack.c.l.b16 %v392
    %v528 = vunpack.c.l.b16 %v393
    %v529 = vunpack.c.l.b16 %v394
    %v530 = vunpack.c.l.b16 %v395
    %v531 = vunpack.c.l.b16 %v396
    %v532 = vunpack.c.l.b16 %v397
    %v533 = vunpack.c.l.b16 %v398
    %v534 = vunpack.c.l.b16 %v399
    %v535 = vunpack.c.l.b16 %v400
    %v536 = vunpack.c.l.b16 %v401
    %v537 = vunpack.c.l.b16 %v402
    %v538 = vunpack.c.l.b16 %v403
    %v539 = vunpack.c.l.b16 %v404
    %v540 = vunpack.c.l.b16 %v405
    %v541 = vunpack.c.l.b16 %v406
    %v542 = vunpack.c.l.b16 %v407
    %v543 = vunpack.c.l.b16 %v408
    %v544 = vunpack.c.l.b16 %v409
    %v545 = vunpack.c.l.b16 %v410
    %v546 = vunpack.c.l.b16 %v411
    %v547 = vunpack.c.l.b16 %v412
    %v548 = vunpack.c.l.b16 %v413
    %v549 = vunpack.c.l.b16 %v414
    %v550 = vunpack.c.l.b16 %v415
    %v551 = vunpack.c.l.b16 %v416
    %v552 = vunpack.c.l.b16 %v417
    %v553 = vunpack.c.l.b16 %v418
    %v554 = vunpack.c.l.b16 %v419
    %v555 = vunpack.c.l.b16 %v420
    %v556 = vunpack.c.l.b16 %v421
    %v557 = vunpack.c.l.b16 %v422
    %v558 = vunpack.c.l.b16 %v423
    %v559 = vunpack.c.l.b16 %v424
    %v560 = vpack.c.b16 %v497, %v496
    %v561 = vpack.c.b16 %v499, %v498
    %v562 = vpack.c.b16 %v501, %v500
    %v563 = vpack.c.b16 %v503, %v502
    %v564 = vpack.c.b16 %v505, %v504
    %v565 = vpack.c.b16 %v507, %v506
    %v566 = vpack.c.b16 %v509, %v508
    %v567 = vpack.c.b16 %v511, %v510
    %v568 = vpack.c.b16 %v513, %v512
    %v569 = vpack.c.b16 %v515, %v514
    %v570 = vpack.c.b16 %v517, %v516
    %v571 = vpack.c.b16 %v519, %v518
    %v572 = vpack.c.b16 %v521, %v520
    %v573 = vpack.c.b16 %v523, %v522
    %v574 = vpack.c.b16 %v525, %v524
    %v575 = vpack.c.b16 %v527, %v526
    %v576 = vpack.c.b16 %v529, %v528
    %v577 = vpack.c.b16 %v531, %v530
    %v578 = vpack.c.b16 %v533, %v532
    %v579 = vpack.c.b16 %v535, %v534
    %v580 = vpack.c.b16 %v537, %v536
    %v581 = vpack.c.b16 %v539, %v538
    %v582 = vpack.c.b16 %v541, %v540
    %v583 = vpack.c.b16 %v543, %v542
    %v584 = vpack.c.b16 %v545, %v544
    %v585 = vpack.c.b16 %v547, %v546
    %v586 = vpack.c.b16 %v549, %v548
    %v587 = vpack.c.b16 %v551, %v550
    %v588 = vpack.c.b16 %v553, %v552
    %v589 = vpack.c.b16 %v555, %v554
    %v590 = vpack.c.b16 %v557, %v556
    %v591 = vpack.c.b16 %v559, %v558
    %624 = vmatprep.subr.bf16.mxu0 0
    %625 = vmatpush1.bf16.msra.mxu0 %v560
    %626 = vmatprep.subr.bf16.mxu0 0
    %627 = vmatpush1.bf16.msra.mxu0 %v561
    %628 = vmatprep.subr.bf16.mxu0 0
    %629 = vmatpush1.bf16.msra.mxu0 %v562
    %630 = vmatprep.subr.bf16.mxu0 0
    %631 = vmatpush1.bf16.msra.mxu0 %v563
    %632 = vmatprep.subr.bf16.mxu0 0
    %633 = vmatpush1.bf16.msra.mxu0 %v564
    %634 = vmatprep.subr.bf16.mxu0 0
    %635 = vmatpush1.bf16.msra.mxu0 %v565
    %636 = vmatprep.subr.bf16.mxu0 0
    %637 = vmatpush1.bf16.msra.mxu0 %v566
    %638 = vmatprep.subr.bf16.mxu0 0
    %639 = vmatpush1.bf16.msra.mxu0 %v567
    %640 = vmatprep.subr.bf16.mxu0 0
    %641 = vmatpush1.bf16.msra.mxu0 %v568
    %642 = vmatprep.subr.bf16.mxu0 0
    %643 = vmatpush1.bf16.msra.mxu0 %v569
    %644 = vmatprep.subr.bf16.mxu0 0
    %645 = vmatpush1.bf16.msra.mxu0 %v570
    %646 = vmatprep.subr.bf16.mxu0 0
    %647 = vmatpush1.bf16.msra.mxu0 %v571
    %648 = vmatprep.subr.bf16.mxu0 0
    %649 = vmatpush1.bf16.msra.mxu0 %v572
    %650 = vmatprep.subr.bf16.mxu0 0
    %651 = vmatpush1.bf16.msra.mxu0 %v573
    %652 = vmatprep.subr.bf16.mxu0 0
    %653 = vmatpush1.bf16.msra.mxu0 %v574
    %654 = vmatprep.subr.bf16.mxu0 0
    %655 = vmatpush1.bf16.msra.mxu0 %v575
    %656 = vmatprep.mubr.bf16.mxu0 %v358
    %657 = vmatmul.mubr.bf16.gmra.mrb[0].mxu0 %v357
    %v658 = vpop.f32.mrb[0].mxu0
    %v659 = vadd.f32 %v430, %v658
    %v660 = vpop.f32.mrb[0].mxu0
    %v661 = vpop.f32.mrb[0].mxu0
    %v662 = vpop.f32.mrb[0].mxu0
    %663 = vdwg.mxu0
    %664 = vmatprep.subr.bf16.mxu0 0
    %665 = vmatpush1.bf16.msra.mxu0 %v576
    %666 = vmatprep.subr.bf16.mxu0 0
    %667 = vmatpush1.bf16.msra.mxu0 %v577
    %668 = vmatprep.subr.bf16.mxu0 0
    %669 = vmatpush1.bf16.msra.mxu0 %v578
    %670 = vmatprep.subr.bf16.mxu0 0
    %671 = vmatpush1.bf16.msra.mxu0 %v579
    %672 = vmatprep.subr.bf16.mxu0 0
    %673 = vmatpush1.bf16.msra.mxu0 %v580
    %674 = vmatprep.subr.bf16.mxu0 0
    %675 = vmatpush1.bf16.msra.mxu0 %v581
    %676 = vmatprep.subr.bf16.mxu0 0
    %677 = vmatpush1.bf16.msra.mxu0 %v582
    %678 = vmatprep.subr.bf16.mxu0 0
    %679 = vmatpush1.bf16.msra.mxu0 %v583
    %680 = vmatprep.subr.bf16.mxu0 0
    %681 = vmatpush1.bf16.msra.mxu0 %v584
    %682 = vmatprep.subr.bf16.mxu0 0
    %683 = vmatpush1.bf16.msra.mxu0 %v585
    %684 = vmatprep.subr.bf16.mxu0 0
    %685 = vmatpush1.bf16.msra.mxu0 %v586
    %686 = vmatprep.subr.bf16.mxu0 0
    %687 = vmatpush1.bf16.msra.mxu0 %v587
    %688 = vmatprep.subr.bf16.mxu0 0
    %689 = vmatpush1.bf16.msra.mxu0 %v588
    %690 = vmatprep.subr.bf16.mxu0 0
    %691 = vmatpush1.bf16.msra.mxu0 %v589
    %692 = vmatprep.subr.bf16.mxu0 0
    %693 = vmatpush1.bf16.msra.mxu0 %v590
    %694 = vmatprep.subr.bf16.mxu0 0
    %695 = vmatpush1.bf16.msra.mxu0 %v591
    %696 = vmatprep.mubr.bf16.mxu0 %v360
    %697 = vmatmul.mubr.bf16.gmra.mrb[0].mxu0 %v359
    %v698 = vpop.f32.mrb[0].mxu0
    %v699 = vadd.f32 %v659, %v698
    %v700 = vpop.f32.mrb[0].mxu0
    %v701 = vpop.f32.mrb[0].mxu0
    %v702 = vpop.f32.mrb[0].mxu0
    %703 = vdwg.mxu0
    %v704 = vmax.f32 %v699, 0.0
    %v705 = vpack.c.bf16 %v704, %v704
    %v706 = vld [vmem:[#allocation8] sm:$0xf]
    %v707 = vld [vmem:[#allocation8 + $0x4] sm:$0xf]
    %v708 = vld [vmem:[#allocation8 + $0x8] sm:$0xf]
    %v709 = vld [vmem:[#allocation8 + $0xc] sm:$0xf]
    %v710 = vld [vmem:[#allocation8 + $0x10] sm:$0xf]
    %v711 = vld [vmem:[#allocation8 + $0x14] sm:$0xf]
    %v712 = vld [vmem:[#allocation8 + $0x18] sm:$0xf]
    %v713 = vld [vmem:[#allocation8 + $0x1c] sm:$0xf]
    %v714 = vld [vmem:[#allocation8 + $0x20] sm:$0xf]
    %v715 = vld [vmem:[#allocation8 + $0x24] sm:$0xf]
    %v716 = vld [vmem:[#allocation8 + $0x28] sm:$0xf]
    %v717 = vld [vmem:[#allocation8 + $0x2c] sm:$0xf]
    %v718 = vld [vmem:[#allocation8 + $0x30] sm:$0xf]
    %v719 = vld [vmem:[#allocation8 + $0x34] sm:$0xf]
    %v720 = vld [vmem:[#allocation8 + $0x38] sm:$0xf]
    %v721 = vld [vmem:[#allocation8 + $0x3c] sm:$0xf]
    %v722 = vld [vmem:[%s5] sm:$0x1]
    %v724 = vlaneseq
    %v725 = vshrl.u32 %v724, 7
    %v726 = vsub.s32 0, %v725
    %v727 = vrot.slane %v722, %v726
    %v745 = vunpack.c.l.b16 %v706
    %v746 = vunpack.c.l.b16 %v707
    %v747 = vunpack.c.l.b16 %v708
    %v748 = vunpack.c.l.b16 %v709
    %v749 = vunpack.c.l.b16 %v710
    %v750 = vunpack.c.l.b16 %v711
    %v751 = vunpack.c.l.b16 %v712
    %v752 = vunpack.c.l.b16 %v713
    %v753 = vunpack.c.l.b16 %v714
    %v754 = vunpack.c.l.b16 %v715
    %v755 = vunpack.c.l.b16 %v716
    %v756 = vunpack.c.l.b16 %v717
    %v757 = vunpack.c.l.b16 %v718
    %v758 = vunpack.c.l.b16 %v719
    %v759 = vunpack.c.l.b16 %v720
    %v760 = vunpack.c.l.b16 %v721
    %v761 = vpack.c.b16 %v746, %v745
    %v762 = vpack.c.b16 %v748, %v747
    %v763 = vpack.c.b16 %v750, %v749
    %v764 = vpack.c.b16 %v752, %v751
    %v765 = vpack.c.b16 %v754, %v753
    %v766 = vpack.c.b16 %v756, %v755
    %v767 = vpack.c.b16 %v758, %v757
    %v768 = vpack.c.b16 %v760, %v759
    %777 = vmatprep.subr.bf16.mxu0 0
    %778 = vmatpush1.bf16.msra.mxu0 %v761
    %779 = vmatprep.subr.bf16.mxu0 0
    %780 = vmatpush1.bf16.msra.mxu0 %v762
    %781 = vmatprep.subr.bf16.mxu0 0
    %782 = vmatpush1.bf16.msra.mxu0 %v763
    %783 = vmatprep.subr.bf16.mxu0 0
    %784 = vmatpush1.bf16.msra.mxu0 %v764
    %785 = vmatprep.subr.bf16.mxu0 0
    %786 = vmatpush1.bf16.msra.mxu0 %v765
    %787 = vmatprep.subr.bf16.mxu0 0
    %788 = vmatpush1.bf16.msra.mxu0 %v766
    %789 = vmatprep.subr.bf16.mxu0 0
    %790 = vmatpush1.bf16.msra.mxu0 %v767
    %791 = vmatprep.subr.bf16.mxu0 0
    %792 = vmatpush1.bf16.msra.mxu0 %v768
    %793 = vmatprep.subr.bf16.mxu0 0
    %794 = vmatpush1.bf16.msra.mxu0 0
    %795 = vmatprep.subr.bf16.mxu0 0
    %796 = vmatpush1.bf16.msra.mxu0 0
    %797 = vmatprep.subr.bf16.mxu0 0
    %798 = vmatpush1.bf16.msra.mxu0 0
    %799 = vmatprep.subr.bf16.mxu0 0
    %800 = vmatpush1.bf16.msra.mxu0 0
    %801 = vmatprep.subr.bf16.mxu0 0
    %802 = vmatpush1.bf16.msra.mxu0 0
    %803 = vmatprep.subr.bf16.mxu0 0
    %804 = vmatpush1.bf16.msra.mxu0 0
    %805 = vmatprep.subr.bf16.mxu0 0
    %806 = vmatpush1.bf16.msra.mxu0 0
    %807 = vmatprep.subr.bf16.mxu0 0
    %808 = vmatpush1.bf16.msra.mxu0 0
    %809 = vmatprep.mubr.bf16.mxu0 0
    %810 = vmatmul.mubr.bf16.gmra.mrb[0].mxu0 %v705
    %v811 = vpop.f32.mrb[0].mxu0
    %v812 = vadd.f32 %v727, %v811
    %v813 = vpop.f32.mrb[0].mxu0
    %v814 = vpop.f32.mrb[0].mxu0
    %v815 = vpop.f32.mrb[0].mxu0
    %816 = vdwg.mxu0
    %817 = vst [vmem:[#allocation10] sm:$0xff] %v812
    // Predicated region
    $region42: #{_dqn_mlp_call.1} parent=1 // pred_check
      _
    $region43: #{_dqn_mlp_call.1} parent=1 // pred_check_branch
      %819 = sbr.rel (0) target = $region45
    $region44: #{_dqn_mlp_call.1} parent=1 // pred_region
      %s821 = ssub.s32 128, 128
      %822 = vsyncadd [#allocation4], %s821
      %s824 = sshll.u32 [#allocation10], 4
      %s825 = int_to_ptr.vmem [resolvable:$true] %s824
      %827 = dma.vmem_to_hbm [thread:$0]  %s825, 128, %s6, [#allocation4]
    $region45: #{_dqn_mlp_call.1} parent=1 // pred_fallthru
      _
    // Predicated region
    $region46: #{_dqn_mlp_call.1} parent=1 // pred_check
      _
    $region47: #{_dqn_mlp_call.1} parent=1 // pred_check_branch
      %829 = sbr.rel (0) target = $region49
    $region48: #{_dqn_mlp_call.1} parent=1 // pred_region
      %830 = dma.done [#allocation4], 128
    $region49: #{_dqn_mlp_call.1} parent=1 // pred_fallthru
      _
    %831 = vsyncpa [#allocation3], 1
    %832 = vsyncpa [#allocation6], 1
    %833 = vsyncpa [#allocation9], 1
    %834 = vsyncpa [#allocation4], 1

</llo_original>
